<compile_context>
chip_gen: v6e
topology: v6e:2x2x1
jax: 0.10.0
libtpu: 0.0.40
codegen_flags: <defaults>
</compile_context>

<pallas_src>
import functools

import jax
import jax.numpy as jnp
from jax.experimental import pallas as pl
from jax.experimental.pallas import tpu as pltpu

_LANE = 128
_SUBLANE = 8


def _round_up(v, m):
    return ((v + m - 1) // m) * m


def _dice_partial_kernel(x_ref, t_ref, inter_ref, denom_ref, *, d_total, td, kpc):
    """Accumulate per-sample partial numerator/denominator for one (N-tile, D-chunk)."""
    p = pl.program_id(1)
    k = pl.program_id(2)

    @pl.when(k == 0)
    def _init():
        inter_ref[...] = jnp.zeros_like(inter_ref)
        denom_ref[...] = jnp.zeros_like(denom_ref)

    # Global element offset of this block along the flattened per-sample axis.
    dstart = (p * kpc + k) * td

    def _accumulate(x, t):
        pi = jnp.sum(x * t, axis=1, keepdims=True)   # (TN, 1): partial sum(x*t)
        pd = jnp.sum(x + t, axis=1, keepdims=True)   # (TN, 1): == sum(x)+sum(t)
        # Lane-broadcast accumulate into the (TN, 128) VMEM-resident output
        # block (all lanes hold the same value; lane 0 is read by the wrapper).
        inter_ref[...] += pi
        denom_ref[...] += pd

    @pl.when(dstart + td <= d_total)
    def _full_block():
        _accumulate(x_ref[...].astype(jnp.float32), t_ref[...].astype(jnp.float32))

    @pl.when(jnp.logical_and(dstart < d_total, dstart + td > d_total))
    def _tail_block():
        # Partial last block along D: out-of-range lanes are undefined on TPU,
        # so zero them before summing.
        col = jax.lax.broadcasted_iota(jnp.int32, x_ref.shape, 1)
        valid = (dstart + col) < d_total
        x = jnp.where(valid, x_ref[...].astype(jnp.float32), 0.0)
        t = jnp.where(valid, t_ref[...].astype(jnp.float32), 0.0)
        _accumulate(x, t)
    # Fully out-of-range steps (only the clamped redundant reads when P does
    # not divide the number of D blocks) fall through with no compute.


def binary_dice_loss(inputs, targets, *, vmem_budget_bytes=12 * 1024 * 1024):
    """Pallas equivalent of BinaryDiceLoss().forward(inputs, targets)."""
    N = targets.shape[0]
    x = inputs.reshape(N, -1)      # free reshape, no data movement
    t = targets.reshape(N, -1)
    D = x.shape[1]

    # Batch tile: whole batch if it fits one sublane group, else 8 rows/tile.
    TN = N if N <= _SUBLANE else _SUBLANE
    n_tiles = pl.cdiv(N, TN)
    NP = n_tiles * TN

    # Bytes of one lane-column of a (TN, TD) block, accounting for sublane
    # padding (a TN<8 f32 block still occupies 8 sublanes in VMEM).
    def _pad_col_bytes(tn, itemsize):
        return _round_up(tn * itemsize, 32)

    col_bytes = (2 * (_pad_col_bytes(TN, x.dtype.itemsize)
                      + _pad_col_bytes(TN, t.dtype.itemsize))   # double-buffered inputs
                 + 2 * _pad_col_bytes(TN, 4))                   # ~2 f32 elementwise temps
    TD = max(_LANE, (vmem_budget_bytes // col_bytes) // _LANE * _LANE)
    TD = min(TD, _round_up(D, _LANE))

    d_blocks = pl.cdiv(D, TD)
    P = 2 if d_blocks >= 2 else 1          # independent D chunks (v7x megacore)
    kpc = pl.cdiv(d_blocks, P)             # reduction steps per chunk

    def in_map(n, p, k):
        # Clamp so redundant trailing steps of a chunk never issue an
        # out-of-range DMA; their compute is skipped in-kernel (dstart >= D).
        return (n, jnp.minimum(p * kpc + k, d_blocks - 1))

    def out_map(n, p, k):
        return (p, n, 0)

    kernel = functools.partial(_dice_partial_kernel, d_total=D, td=TD, kpc=kpc)

    out_inter, out_denom = pl.pallas_call(
        kernel,
        out_shape=(jax.ShapeDtypeStruct((P, NP, _LANE), jnp.float32),
                   jax.ShapeDtypeStruct((P, NP, _LANE), jnp.float32)),
        grid=(n_tiles, P, kpc),
        in_specs=[pl.BlockSpec((TN, TD), in_map),
                  pl.BlockSpec((TN, TD), in_map)],
        out_specs=(pl.BlockSpec((None, TN, _LANE), out_map),
                   pl.BlockSpec((None, TN, _LANE), out_map)),
        compiler_params=pltpu.CompilerParams(
            dimension_semantics=("parallel", "parallel", "arbitrary"),
            vmem_limit_bytes=32 * 1024 * 1024),
    )(x, t)

    # Tiny epilogue in plain JAX: combine the P chunk partials (lane 0 only --
    # all lanes of a partial carry the same value), drop padded batch rows.
    smooth = jnp.float32(1.0)
    inter = jnp.sum(out_inter[:, :N, 0], axis=0)   # (N,)
    denom = jnp.sum(out_denom[:, :N, 0], axis=0)   # (N,)
    dice = (2.0 * inter + smooth) / (denom + smooth)
    return 1.0 - jnp.sum(dice) / N


def _reference(inputs, targets):
    N = targets.shape[0]
    smooth = 1.0
    x = inputs.reshape(N, -1).astype(jnp.float32)
    t = targets.reshape(N, -1).astype(jnp.float32)
    inter = jnp.sum(x * t, axis=1)
    dice = (2.0 * inter + smooth) / (jnp.sum(x, axis=1) + jnp.sum(t, axis=1) + smooth)
    return 1.0 - jnp.sum(dice) / N


if __name__ == "__main__":
    key = jax.random.PRNGKey(0)
    k1, k2, k3, k4, k5, k6 = jax.random.split(key, 6)

    # Case 1: NCHW, batch=2, channels=4, spatial=16x16 (D=1024, 128-aligned,
    # single full block).
    x = jax.nn.sigmoid(jax.random.normal(k1, (2, 4, 16, 16), dtype=jnp.float32))
    targets = (jax.random.uniform(k2, (2, 4, 16, 16)) > 0.5).astype(jnp.float32)
    loss = binary_dice_loss(x, targets)
    jax.block_until_ready(loss)
    ref = _reference(x, targets)
    assert jnp.allclose(loss, ref, atol=1e-5, rtol=1e-5), (loss, ref)

    # Case 2: non-128-aligned D (2, 3, 33, 33) -> exercises in-kernel tail
    # masking (no wrapper-side padding).
    x2 = jax.nn.sigmoid(jax.random.normal(k3, (2, 3, 33, 33), dtype=jnp.float32))
    t2 = (jax.random.uniform(k4, (2, 3, 33, 33)) > 0.5).astype(jnp.float32)
    loss2 = binary_dice_loss(x2, t2)
    jax.block_until_ready(loss2)
    ref2 = _reference(x2, t2)
    assert jnp.allclose(loss2, ref2, atol=1e-5, rtol=1e-5), (loss2, ref2)

    # Case 3: batch > 8 with a tiny VMEM budget -> exercises N tiling with a
    # partial last N block, P=2 parallel D chunks, clamped redundant steps and
    # multi-step accumulation (init / accumulate / resident output).
    x3 = jax.nn.sigmoid(jax.random.normal(k5, (12, 3, 33, 33), dtype=jnp.float32))
    t3 = (jax.random.uniform(k6, (12, 3, 33, 33)) > 0.5).astype(jnp.float32)
    loss3 = binary_dice_loss(x3, t3, vmem_budget_bytes=64 * 1024)
    jax.block_until_ready(loss3)
    ref3 = _reference(x3, t3)
    assert jnp.allclose(loss3, ref3, atol=1e-5, rtol=1e-5), (loss3, ref3)

    print("KERNEL_OK")
</pallas_src>

<mosaic_0001>
module attributes {stable_mosaic.version = 11 : i64} {
  func.func @_dice_partial_kernel(%arg0: i32, %arg1: i32, %arg2: i32, %arg3: memref<2x1024xf32, #tpu.memory_space<vmem>>, %arg4: memref<2x1024xf32, #tpu.memory_space<vmem>>, %arg5: memref<1x2x128xf32, #tpu.memory_space<vmem>>, %arg6: memref<1x2x128xf32, #tpu.memory_space<vmem>>) attributes {dimension_semantics = [#tpu.dimension_semantics<parallel>, #tpu.dimension_semantics<parallel>, #tpu.dimension_semantics<arbitrary>], iteration_bounds = array<i64: 1, 1, 1>, scalar_prefetch = 0 : i64, scratch_operands = 0 : i64, tpu.core_type = #tpu.core_type<tc>, window_params = [{transform_indices = @transform_0, window_bounds = array<i64: 2, 1024>}, {transform_indices = @transform_1, window_bounds = array<i64: 2, 1024>}, {transform_indices = @transform_2, window_bounds = array<i64: 1, 2, 128>}, {transform_indices = @transform_3, window_bounds = array<i64: 1, 2, 128>}]} {
    %c0_i32 = arith.constant 0 : i32
    %0 = arith.cmpi eq, %arg2, %c0_i32 : i32
    %1 = arith.extui %0 : i1 to i32
    %c0_i32_0 = arith.constant 0 : i32
    %2 = arith.cmpi ne, %1, %c0_i32_0 : i32
    scf.if %2 {
      %cst = arith.constant 0.000000e+00 : f32
      %16 = vector.broadcast %cst : f32 to vector<2x128xf32>
      %c0 = arith.constant 0 : index
      %c0_8 = arith.constant 0 : index
      %c0_9 = arith.constant 0 : index
      %17 = vector.load %arg5[%c0, %c0_8, %c0_9] : memref<1x2x128xf32, #tpu.memory_space<vmem>>, vector<1x2x128xf32>
      %18 = vector.shape_cast %17 : vector<1x2x128xf32> to vector<2x128xf32>
      %19 = vector.shape_cast %16 : vector<2x128xf32> to vector<1x2x128xf32>
      tpu.vector_store %arg5[%c0, %c0_8, %c0_9], %19 {strides = array<i32>} : memref<1x2x128xf32, #tpu.memory_space<vmem>>, vector<1x2x128xf32>,
      %cst_10 = arith.constant 0.000000e+00 : f32
      %20 = vector.broadcast %cst_10 : f32 to vector<2x128xf32>
      %c0_11 = arith.constant 0 : index
      %c0_12 = arith.constant 0 : index
      %c0_13 = arith.constant 0 : index
      %21 = vector.load %arg6[%c0_11, %c0_12, %c0_13] : memref<1x2x128xf32, #tpu.memory_space<vmem>>, vector<1x2x128xf32>
      %22 = vector.shape_cast %21 : vector<1x2x128xf32> to vector<2x128xf32>
      %23 = vector.shape_cast %20 : vector<2x128xf32> to vector<1x2x128xf32>
      tpu.vector_store %arg6[%c0_11, %c0_12, %c0_13], %23 {strides = array<i32>} : memref<1x2x128xf32, #tpu.memory_space<vmem>>, vector<1x2x128xf32>,
    } else {
    }
    %c1_i32 = arith.constant 1 : i32
    %3 = arith.muli %arg1, %c1_i32 : i32
    %4 = arith.addi %3, %arg2 : i32
    %c1024_i32 = arith.constant 1024 : i32
    %5 = arith.muli %4, %c1024_i32 : i32
    %c1024_i32_1 = arith.constant 1024 : i32
    %6 = arith.addi %5, %c1024_i32_1 : i32
    %c1024_i32_2 = arith.constant 1024 : i32
    %7 = arith.cmpi sle, %6, %c1024_i32_2 : i32
    %8 = arith.extui %7 : i1 to i32
    %c0_i32_3 = arith.constant 0 : i32
    %9 = arith.cmpi ne, %8, %c0_i32_3 : i32
    scf.if %9 {
      %c0 = arith.constant 0 : index
      %c0_8 = arith.constant 0 : index
      %16 = vector.load %arg3[%c0, %c0_8] : memref<2x1024xf32, #tpu.memory_space<vmem>>, vector<2x1024xf32>
      %c0_9 = arith.constant 0 : index
      %c0_10 = arith.constant 0 : index
      %17 = vector.load %arg4[%c0_9, %c0_10] : memref<2x1024xf32, #tpu.memory_space<vmem>>, vector<2x1024xf32>
      %18 = arith.mulf %16, %17 : vector<2x1024xf32>
      %cst = arith.constant dense<0.000000e+00> : vector<2xf32>
      %19 = vector.multi_reduction <add>, %18, %cst [1] : vector<2x1024xf32> to vector<2xf32>
      %20 = vector.shape_cast %19 : vector<2xf32> to vector<2x1xf32>
      %21 = arith.addf %16, %17 : vector<2x1024xf32>
      %cst_11 = arith.constant dense<0.000000e+00> : vector<2xf32>
      %22 = vector.multi_reduction <add>, %21, %cst_11 [1] : vector<2x1024xf32> to vector<2xf32>
      %23 = vector.shape_cast %22 : vector<2xf32> to vector<2x1xf32>
      %c0_12 = arith.constant 0 : index
      %c0_13 = arith.constant 0 : index
      %c0_14 = arith.constant 0 : index
      %24 = vector.load %arg5[%c0_12, %c0_13, %c0_14] : memref<1x2x128xf32, #tpu.memory_space<vmem>>, vector<1x2x128xf32>
      %25 = vector.shape_cast %24 : vector<1x2x128xf32> to vector<2x128xf32>
      %26 = vector.broadcast %20 : vector<2x1xf32> to vector<2x128xf32>
      %27 = arith.addf %25, %26 : vector<2x128xf32>
      %c0_15 = arith.constant 0 : index
      %c0_16 = arith.constant 0 : index
      %c0_17 = arith.constant 0 : index
      %28 = vector.load %arg5[%c0_15, %c0_16, %c0_17] : memref<1x2x128xf32, #tpu.memory_space<vmem>>, vector<1x2x128xf32>
      %29 = vector.shape_cast %28 : vector<1x2x128xf32> to vector<2x128xf32>
      %30 = vector.shape_cast %27 : vector<2x128xf32> to vector<1x2x128xf32>
      tpu.vector_store %arg5[%c0_15, %c0_16, %c0_17], %30 {strides = array<i32>} : memref<1x2x128xf32, #tpu.memory_space<vmem>>, vector<1x2x128xf32>,
      %c0_18 = arith.constant 0 : index
      %c0_19 = arith.constant 0 : index
      %c0_20 = arith.constant 0 : index
      %31 = vector.load %arg6[%c0_18, %c0_19, %c0_20] : memref<1x2x128xf32, #tpu.memory_space<vmem>>, vector<1x2x128xf32>
      %32 = vector.shape_cast %31 : vector<1x2x128xf32> to vector<2x128xf32>
      %33 = vector.broadcast %23 : vector<2x1xf32> to vector<2x128xf32>
      %34 = arith.addf %32, %33 : vector<2x128xf32>
      %c0_21 = arith.constant 0 : index
      %c0_22 = arith.constant 0 : index
      %c0_23 = arith.constant 0 : index
      %35 = vector.load %arg6[%c0_21, %c0_22, %c0_23] : memref<1x2x128xf32, #tpu.memory_space<vmem>>, vector<1x2x128xf32>
      %36 = vector.shape_cast %35 : vector<1x2x128xf32> to vector<2x128xf32>
      %37 = vector.shape_cast %34 : vector<2x128xf32> to vector<1x2x128xf32>
      tpu.vector_store %arg6[%c0_21, %c0_22, %c0_23], %37 {strides = array<i32>} : memref<1x2x128xf32, #tpu.memory_space<vmem>>, vector<1x2x128xf32>,
    } else {
    }
    %c1024_i32_4 = arith.constant 1024 : i32
    %10 = arith.cmpi slt, %5, %c1024_i32_4 : i32
    %c1024_i32_5 = arith.constant 1024 : i32
    %11 = arith.addi %5, %c1024_i32_5 : i32
    %c1024_i32_6 = arith.constant 1024 : i32
    %12 = arith.cmpi sgt, %11, %c1024_i32_6 : i32
    %13 = arith.andi %10, %12 : i1
    %14 = arith.extui %13 : i1 to i32
    %c0_i32_7 = arith.constant 0 : i32
    %15 = arith.cmpi ne, %14, %c0_i32_7 : i32
    scf.if %15 {
      %16 = tpu.iota {dimensions = array<i32: 1>} : vector<2x1024xi32>
      %17 = vector.broadcast %5 : i32 to vector<2x1024xi32>
      %18 = arith.addi %17, %16 : vector<2x1024xi32>
      %c1024_i32_8 = arith.constant 1024 : i32
      %19 = vector.broadcast %c1024_i32_8 : i32 to vector<2x1024xi32>
      %20 = arith.cmpi slt, %18, %19 : vector<2x1024xi32>
      %c0 = arith.constant 0 : index
      %c0_9 = arith.constant 0 : index
      %21 = vector.load %arg3[%c0, %c0_9] : memref<2x1024xf32, #tpu.memory_space<vmem>>, vector<2x1024xf32>
      %cst = arith.constant 0.000000e+00 : f32
      %22 = vector.broadcast %cst : f32 to vector<2x1024xf32>
      %23 = arith.select %20, %21, %22 : vector<2x1024xi1>, vector<2x1024xf32>
      %c0_10 = arith.constant 0 : index
      %c0_11 = arith.constant 0 : index
      %24 = vector.load %arg4[%c0_10, %c0_11] : memref<2x1024xf32, #tpu.memory_space<vmem>>, vector<2x1024xf32>
      %cst_12 = arith.constant 0.000000e+00 : f32
      %25 = vector.broadcast %cst_12 : f32 to vector<2x1024xf32>
      %26 = arith.select %20, %24, %25 : vector<2x1024xi1>, vector<2x1024xf32>
      %27 = arith.mulf %23, %26 : vector<2x1024xf32>
      %cst_13 = arith.constant dense<0.000000e+00> : vector<2xf32>
      %28 = vector.multi_reduction <add>, %27, %cst_13 [1] : vector<2x1024xf32> to vector<2xf32>
      %29 = vector.shape_cast %28 : vector<2xf32> to vector<2x1xf32>
      %30 = arith.addf %23, %26 : vector<2x1024xf32>
      %cst_14 = arith.constant dense<0.000000e+00> : vector<2xf32>
      %31 = vector.multi_reduction <add>, %30, %cst_14 [1] : vector<2x1024xf32> to vector<2xf32>
      %32 = vector.shape_cast %31 : vector<2xf32> to vector<2x1xf32>
      %c0_15 = arith.constant 0 : index
      %c0_16 = arith.constant 0 : index
      %c0_17 = arith.constant 0 : index
      %33 = vector.load %arg5[%c0_15, %c0_16, %c0_17] : memref<1x2x128xf32, #tpu.memory_space<vmem>>, vector<1x2x128xf32>
      %34 = vector.shape_cast %33 : vector<1x2x128xf32> to vector<2x128xf32>
      %35 = vector.broadcast %29 : vector<2x1xf32> to vector<2x128xf32>
      %36 = arith.addf %34, %35 : vector<2x128xf32>
      %c0_18 = arith.constant 0 : index
      %c0_19 = arith.constant 0 : index
      %c0_20 = arith.constant 0 : index
      %37 = vector.load %arg5[%c0_18, %c0_19, %c0_20] : memref<1x2x128xf32, #tpu.memory_space<vmem>>, vector<1x2x128xf32>
      %38 = vector.shape_cast %37 : vector<1x2x128xf32> to vector<2x128xf32>
      %39 = vector.shape_cast %36 : vector<2x128xf32> to vector<1x2x128xf32>
      tpu.vector_store %arg5[%c0_18, %c0_19, %c0_20], %39 {strides = array<i32>} : memref<1x2x128xf32, #tpu.memory_space<vmem>>, vector<1x2x128xf32>,
      %c0_21 = arith.constant 0 : index
      %c0_22 = arith.constant 0 : index
      %c0_23 = arith.constant 0 : index
      %40 = vector.load %arg6[%c0_21, %c0_22, %c0_23] : memref<1x2x128xf32, #tpu.memory_space<vmem>>, vector<1x2x128xf32>
      %41 = vector.shape_cast %40 : vector<1x2x128xf32> to vector<2x128xf32>
      %42 = vector.broadcast %32 : vector<2x1xf32> to vector<2x128xf32>
      %43 = arith.addf %41, %42 : vector<2x128xf32>
      %c0_24 = arith.constant 0 : index
      %c0_25 = arith.constant 0 : index
      %c0_26 = arith.constant 0 : index
      %44 = vector.load %arg6[%c0_24, %c0_25, %c0_26] : memref<1x2x128xf32, #tpu.memory_space<vmem>>, vector<1x2x128xf32>
      %45 = vector.shape_cast %44 : vector<1x2x128xf32> to vector<2x128xf32>
      %46 = vector.shape_cast %43 : vector<2x128xf32> to vector<1x2x128xf32>
      tpu.vector_store %arg6[%c0_24, %c0_25, %c0_26], %46 {strides = array<i32>} : memref<1x2x128xf32, #tpu.memory_space<vmem>>, vector<1x2x128xf32>,
    } else {
    }
    return
  }
  func.func @transform_0(%arg0: i32, %arg1: i32, %arg2: i32) -> (i32, i32) {
    %c1_i32 = arith.constant 1 : i32
    %0 = arith.muli %arg1, %c1_i32 : i32
    %1 = arith.addi %0, %arg2 : i32
    %c0_i32 = arith.constant 0 : i32
    %2 = arith.minsi %1, %c0_i32 : i32
    %c0_i32_0 = arith.constant 0 : i32
    return %arg0, %2 : i32, i32
  }
  func.func @transform_1(%arg0: i32, %arg1: i32, %arg2: i32) -> (i32, i32) {
    %c1_i32 = arith.constant 1 : i32
    %0 = arith.muli %arg1, %c1_i32 : i32
    %1 = arith.addi %0, %arg2 : i32
    %c0_i32 = arith.constant 0 : i32
    %2 = arith.minsi %1, %c0_i32 : i32
    %c0_i32_0 = arith.constant 0 : i32
    return %arg0, %2 : i32, i32
  }
  func.func @transform_2(%arg0: i32, %arg1: i32, %arg2: i32) -> (i32, i32, i32) {
    %c0_i32 = arith.constant 0 : i32
    %c0_i32_0 = arith.constant 0 : i32
    return %arg1, %arg0, %c0_i32 : i32, i32, i32
  }
  func.func @transform_3(%arg0: i32, %arg1: i32, %arg2: i32) -> (i32, i32, i32) {
    %c0_i32 = arith.constant 0 : i32
    %c0_i32_0 = arith.constant 0 : i32
    return %arg1, %arg0, %c0_i32 : i32, i32, i32
  }
}

</mosaic_0001>

<llo_original>
// kernel: tpu_custom_call.1
$region0: #{tpu_custom_call.1}
  #allocation0 [shape = 'u32[]', space=smem, size = 0x4, offset = 0x4, fixed_abs, tag = 'smem constant byte address 0x4 - core index']
  #allocation1 [shape = 'u32[144,128]{1,0:T(1,128)}', space=vmem, size = 0x12000, scoped, tag = 'internal scratch']
  %s0 = inlined_call_operand.hbm [shape: f32[2,1024], index: 0, kind: input, shape index: {}]
  %s1 = inlined_call_operand.hbm [shape: f32[2,1024], index: 1, kind: input, shape index: {}]
  %s2 = inlined_call_operand.hbm [shape: f32[1,2,128], index: 2, kind: output, shape index: {0}]
  %s3 = inlined_call_operand.hbm [shape: f32[1,2,128], index: 3, kind: output, shape index: {1}]
  %4 = xla_tuple %s2, %s3
  %s5 = sld [smem:[#allocation0]]
  $region46: #{tpu_custom_call.1} parent=0
    _
  %s7 = ssub.s32 1, %s5
  %s8 = scalar_select 0, %s7, %s5
  $region1: #{tpu_custom_call.1} parent=0
    #allocation2 [shape = 'u8[8192]{0}', space=vmem, size = 0x2000, scoped, tag = 'input window, operand 0, single buffered']
    #allocation3 [shape = 's32[1]{0}', space=sflag, size = 0x4, scoped, tag = 'scoped memory for tpu_custom_call.1']
    #allocation4 [shape = 's32[1]{0}', space=sflag, size = 0x4, scoped, tag = 'scoped memory for tpu_custom_call.1']
    #allocation5 [shape = 'u8[8192]{0}', space=vmem, size = 0x2000, scoped, tag = 'input window, operand 1, single buffered']
    #allocation6 [shape = 's32[1]{0}', space=sflag, size = 0x4, scoped, tag = 'scoped memory for tpu_custom_call.1']
    #allocation7 [shape = 'u8[1024]{0}', space=vmem, size = 0x400, scoped, tag = 'output window, operand 0, single buffered']
    #allocation8 [shape = 'u8[1024]{0}', space=vmem, size = 0x400, scoped, tag = 'output window, operand 1, single buffered']
    #allocation9 [shape = 's32[1]{0}', space=sflag, size = 0x4, scoped, tag = 'scoped memory for tpu_custom_call.1']
    %9 = vsyncpa [#allocation3], 0
    %10 = vsyncpa [#allocation6], 0
    %11 = vsyncpa [#allocation4], 0
    %12 = vsyncpa [#allocation9], 0
    // Predicated region
    $region2: #{tpu_custom_call.1} parent=1 // pred_check
      _
    $region3: #{tpu_custom_call.1} parent=1 // pred_check_branch
      %14 = sbr.rel (0) target = $region5
    $region4: #{tpu_custom_call.1} parent=1 // pred_region
      %s15 = sadd.s32 0, 0
      %p16 = scmp.lt.s32.totalorder %s15, 0
      %s17 = scalar_select %p16, %s15, 0
      %s18 = smul.u32 8, %s17
      %s20 = ssub.s32 256, 256
      %21 = vsyncadd [#allocation3], %s20
      %s22 = smul.addr %s18, 32
      %s23 = scalar_lea.hbm %s0, %s22
      %s25 = sshll.u32 [#allocation2], 4
      %s26 = int_to_ptr.vmem [resolvable:$true] %s25
      %28 = dma.hbm_to_vmem [thread:$0]  %s23, 256, %s26, [#allocation3]
    $region5: #{tpu_custom_call.1} parent=1 // pred_fallthru
      _
    // Predicated region
    $region6: #{tpu_custom_call.1} parent=1 // pred_check
      _
    $region7: #{tpu_custom_call.1} parent=1 // pred_check_branch
      %30 = sbr.rel (0) target = $region9
    $region8: #{tpu_custom_call.1} parent=1 // pred_region
      %s31 = sadd.s32 0, 0
      %p32 = scmp.lt.s32.totalorder %s31, 0
      %s33 = scalar_select %p32, %s31, 0
      %s34 = smul.u32 8, %s33
      %s36 = ssub.s32 256, 256
      %37 = vsyncadd [#allocation6], %s36
      %s38 = smul.addr %s34, 32
      %s39 = scalar_lea.hbm %s1, %s38
      %s41 = sshll.u32 [#allocation5], 4
      %s42 = int_to_ptr.vmem [resolvable:$true] %s41
      %44 = dma.hbm_to_vmem [thread:$0]  %s39, 256, %s42, [#allocation6]
    $region9: #{tpu_custom_call.1} parent=1 // pred_fallthru
      _
    // Predicated region
    $region10: #{tpu_custom_call.1} parent=1 // pred_check
      _
    $region11: #{tpu_custom_call.1} parent=1 // pred_check_branch
      %46 = sbr.rel (0) target = $region13
    $region12: #{tpu_custom_call.1} parent=1 // pred_region
      %47 = dma.done [#allocation3], 256
    $region13: #{tpu_custom_call.1} parent=1 // pred_fallthru
      _
    // Predicated region
    $region14: #{tpu_custom_call.1} parent=1 // pred_check
      _
    $region15: #{tpu_custom_call.1} parent=1 // pred_check_branch
      %49 = sbr.rel (0) target = $region17
    $region16: #{tpu_custom_call.1} parent=1 // pred_region
      %50 = dma.done [#allocation6], 256
    $region17: #{tpu_custom_call.1} parent=1 // pred_fallthru
      _
    %s51 = sadd.s32 0, 0
    %p52 = scmp.lt.s32.totalorder %s51, 0
    %s53 = scalar_select %p52, %s51, 0
    %s54 = smul.u32 8, %s53
    %s55 = sadd.s32 0, 0
    %p56 = scmp.lt.s32.totalorder %s55, 0
    %s57 = scalar_select %p56, %s55, 0
    %s58 = smul.u32 8, %s57
    %p59 = scmp.eq.s32.totalorder 0, 0
    // Predicated region
    $region18: #{tpu_custom_call.1} parent=1 // pred_check
      %p60 = pneg %p59
    $region19: #{tpu_custom_call.1} parent=1 // pred_check_branch
      %62 = sbr.rel (%p60) target = $region21
    $region20: #{tpu_custom_call.1} parent=1 // pred_region
      %63 = vst [vmem:[#allocation7] sm:$0x3] 0.0
      %64 = vst [vmem:[#allocation8] sm:$0x3] 0.0
    $region21: #{tpu_custom_call.1} parent=1 // pred_fallthru
      _
    %s65 = sadd.s32 0, 0
    %s66 = smul.u32 %s65, 1024
    %s67 = sadd.s32 %s66, 1024
    %p68 = scmp.le.s32.totalorder %s67, 1024
    // Predicated region
    $region22: #{tpu_custom_call.1} parent=1 // pred_check
      %p69 = pneg %p68
    $region23: #{tpu_custom_call.1} parent=1 // pred_check_branch
      %71 = sbr.rel (%p69) target = $region25
    $region24: #{tpu_custom_call.1} parent=1 // pred_region
      %v72 = vld [vmem:[#allocation2] sm:$0xff]
      %v73 = vld [vmem:[#allocation2 + $0x8] sm:$0xff]
      %v74 = vld [vmem:[#allocation5] sm:$0xff]
      %v75 = vld [vmem:[#allocation5 + $0x8] sm:$0xff]
      %v76 = vmul.f32 %v72, %v74
      %v77 = vmul.f32 %v73, %v75
      %v80 = vcombine.high %v76, %v76
      %v82 = vunpack.c.l.s4 1983009808
      %v83 = vunpack.c.0.s8 %v82
      %v84 = vlaneseq
      %v85 = vshrl.u32 %v84, 7
      %v86 = vsub.s32 %v83, %v85
      %v87 = vrot.slane %v76, %v86
      %v89 = vunpack.c.l.s4 1983009808
      %v90 = vunpack.c.0.s8 %v89
      %v91 = vlaneseq
      %v92 = vshrl.u32 %v91, 7
      %v93 = vsub.s32 %v90, %v92
      %v94 = vrot.slane %v80, %v93
      %v95 = vcombine.high %v87, %v87
      %v96 = vcombine.high %v94, %v94
      %v97 = vcombine.high %v77, %v77
      %v99 = vunpack.c.l.s4 1983009808
      %v100 = vunpack.c.0.s8 %v99
      %v101 = vlaneseq
      %v102 = vshrl.u32 %v101, 7
      %v103 = vsub.s32 %v100, %v102
      %v104 = vrot.slane %v77, %v103
      %v106 = vunpack.c.l.s4 1983009808
      %v107 = vunpack.c.0.s8 %v106
      %v108 = vlaneseq
      %v109 = vshrl.u32 %v108, 7
      %v110 = vsub.s32 %v107, %v109
      %v111 = vrot.slane %v97, %v110
      %v112 = vcombine.high %v104, %v104
      %v113 = vcombine.high %v111, %v111
      %vm122 = vcmask 1041408
      %v123 = vsel %vm122, %v87, 0.0
      %v124 = vsel %vm122, %v95, 0.0
      %v125 = vadd.f32 %v123, %v124
      %v126 = vsel %vm122, %v94, 0.0
      %v127 = vadd.f32 %v125, %v126
      %v128 = vsel %vm122, %v96, 0.0
      %v129 = vadd.f32 %v127, %v128
      %v130 = vsel %vm122, %v104, 0.0
      %v131 = vadd.f32 %v129, %v130
      %v132 = vsel %vm122, %v112, 0.0
      %v133 = vadd.f32 %v131, %v132
      %v134 = vsel %vm122, %v111, 0.0
      %v135 = vadd.f32 %v133, %v134
      %v136 = vsel %vm122, %v113, 0.0
      %v137 = vadd.f32 %v135, %v136
      %138 = vadd.xlane.f32.xlu0 %v137
      %v139 = vpop.xlane.xlu0 %138
      %v140 = vadd.f32 %v72, %v74
      %v141 = vadd.f32 %v73, %v75
      %v144 = vcombine.high %v140, %v140
      %v146 = vunpack.c.l.s4 1983009808
      %v147 = vunpack.c.0.s8 %v146
      %v148 = vlaneseq
      %v149 = vshrl.u32 %v148, 7
      %v150 = vsub.s32 %v147, %v149
      %v151 = vrot.slane %v140, %v150
      %v153 = vunpack.c.l.s4 1983009808
      %v154 = vunpack.c.0.s8 %v153
      %v155 = vlaneseq
      %v156 = vshrl.u32 %v155, 7
      %v157 = vsub.s32 %v154, %v156
      %v158 = vrot.slane %v144, %v157
      %v159 = vcombine.high %v151, %v151
      %v160 = vcombine.high %v158, %v158
      %v161 = vcombine.high %v141, %v141
      %v163 = vunpack.c.l.s4 1983009808
      %v164 = vunpack.c.0.s8 %v163
      %v165 = vlaneseq
      %v166 = vshrl.u32 %v165, 7
      %v167 = vsub.s32 %v164, %v166
      %v168 = vrot.slane %v141, %v167
      %v170 = vunpack.c.l.s4 1983009808
      %v171 = vunpack.c.0.s8 %v170
      %v172 = vlaneseq
      %v173 = vshrl.u32 %v172, 7
      %v174 = vsub.s32 %v171, %v173
      %v175 = vrot.slane %v161, %v174
      %v176 = vcombine.high %v168, %v168
      %v177 = vcombine.high %v175, %v175
      %v186 = vsel %vm122, %v151, 0.0
      %v187 = vsel %vm122, %v159, 0.0
      %v188 = vadd.f32 %v186, %v187
      %v189 = vsel %vm122, %v158, 0.0
      %v190 = vadd.f32 %v188, %v189
      %v191 = vsel %vm122, %v160, 0.0
      %v192 = vadd.f32 %v190, %v191
      %v193 = vsel %vm122, %v168, 0.0
      %v194 = vadd.f32 %v192, %v193
      %v195 = vsel %vm122, %v176, 0.0
      %v196 = vadd.f32 %v194, %v195
      %v197 = vsel %vm122, %v175, 0.0
      %v198 = vadd.f32 %v196, %v197
      %v199 = vsel %vm122, %v177, 0.0
      %v200 = vadd.f32 %v198, %v199
      %201 = vadd.xlane.f32.xlu0 %v200
      %v202 = vpop.xlane.xlu0 %201
      %v203 = vld [vmem:[#allocation7] sm:$0x3]
      %v204 = vadd.f32 %v203, %v139
      %205 = vst [vmem:[#allocation7] sm:$0x3] %v204
      %v206 = vld [vmem:[#allocation8] sm:$0x3]
      %v207 = vadd.f32 %v206, %v202
      %208 = vst [vmem:[#allocation8] sm:$0x3] %v207
    $region25: #{tpu_custom_call.1} parent=1 // pred_fallthru
      _
    %p209 = scmp.lt.s32.totalorder %s66, 1024
    %p210 = scmp.gt.s32.totalorder %s67, 1024
    %p211 = pnand %p209, %p210
    %p212 = pneg %p211
    // Predicated region
    $region26: #{tpu_custom_call.1} parent=1 // pred_check
      _
    $region27: #{tpu_custom_call.1} parent=1 // pred_check_branch
      %214 = sbr.rel (%p211) target = $region29
    $region28: #{tpu_custom_call.1} parent=1 // pred_region
      %v215 = vlaneseq
      %v216 = vand.u32 %v215, 127
      %v217 = vadd.s32 %v216, 128
      %v218 = vadd.s32 %v216, 256
      %v219 = vadd.s32 %v216, 384
      %v220 = vadd.s32 %v216, 512
      %v221 = vadd.s32 %v216, 640
      %v222 = vadd.s32 %v216, 768
      %v223 = vadd.s32 %v216, 896
      %v224 = vstv %s66
      %v225 = vadd.s32 %v224, %v216
      %v226 = vadd.s32 %v224, %v217
      %v227 = vadd.s32 %v224, %v218
      %v228 = vadd.s32 %v224, %v219
      %v229 = vadd.s32 %v224, %v220
      %v230 = vadd.s32 %v224, %v221
      %v231 = vadd.s32 %v224, %v222
      %v232 = vadd.s32 %v224, %v223
      %vm233 = vcmp.lt.s32.totalorder %v225, 1024
      %vm234 = vcmp.lt.s32.totalorder %v226, 1024
      %vm235 = vcmp.lt.s32.totalorder %v227, 1024
      %vm236 = vcmp.lt.s32.totalorder %v228, 1024
      %vm237 = vcmp.lt.s32.totalorder %v229, 1024
      %vm238 = vcmp.lt.s32.totalorder %v230, 1024
      %vm239 = vcmp.lt.s32.totalorder %v231, 1024
      %vm240 = vcmp.lt.s32.totalorder %v232, 1024
      %v241 = vld [vmem:[#allocation2] sm:$0xff]
      %v242 = vld [vmem:[#allocation2 + $0x8] sm:$0xff]
      %v245 = vcombine.high %v241, %v241
      %v247 = vunpack.c.l.s4 1983009808
      %v248 = vunpack.c.0.s8 %v247
      %v249 = vlaneseq
      %v250 = vshrl.u32 %v249, 7
      %v251 = vsub.s32 %v248, %v250
      %v252 = vrot.slane %v241, %v251
      %v254 = vunpack.c.l.s4 1983009808
      %v255 = vunpack.c.0.s8 %v254
      %v256 = vlaneseq
      %v257 = vshrl.u32 %v256, 7
      %v258 = vsub.s32 %v255, %v257
      %v259 = vrot.slane %v245, %v258
      %v260 = vcombine.high %v252, %v252
      %v261 = vcombine.high %v259, %v259
      %v262 = vcombine.high %v242, %v242
      %v264 = vunpack.c.l.s4 1983009808
      %v265 = vunpack.c.0.s8 %v264
      %v266 = vlaneseq
      %v267 = vshrl.u32 %v266, 7
      %v268 = vsub.s32 %v265, %v267
      %v269 = vrot.slane %v242, %v268
      %v271 = vunpack.c.l.s4 1983009808
      %v272 = vunpack.c.0.s8 %v271
      %v273 = vlaneseq
      %v274 = vshrl.u32 %v273, 7
      %v275 = vsub.s32 %v272, %v274
      %v276 = vrot.slane %v262, %v275
      %v277 = vcombine.high %v269, %v269
      %v278 = vcombine.high %v276, %v276
      %v287 = vsel %vm233, %v252, 0.0
      %v288 = vsel %vm234, %v260, 0.0
      %v289 = vsel %vm235, %v259, 0.0
      %v290 = vsel %vm236, %v261, 0.0
      %v291 = vsel %vm237, %v269, 0.0
      %v292 = vsel %vm238, %v277, 0.0
      %v293 = vsel %vm239, %v276, 0.0
      %v294 = vsel %vm240, %v278, 0.0
      %v295 = vld [vmem:[#allocation5] sm:$0xff]
      %v296 = vld [vmem:[#allocation5 + $0x8] sm:$0xff]
      %v299 = vcombine.high %v295, %v295
      %v301 = vunpack.c.l.s4 1983009808
      %v302 = vunpack.c.0.s8 %v301
      %v303 = vlaneseq
      %v304 = vshrl.u32 %v303, 7
      %v305 = vsub.s32 %v302, %v304
      %v306 = vrot.slane %v295, %v305
      %v308 = vunpack.c.l.s4 1983009808
      %v309 = vunpack.c.0.s8 %v308
      %v310 = vlaneseq
      %v311 = vshrl.u32 %v310, 7
      %v312 = vsub.s32 %v309, %v311
      %v313 = vrot.slane %v299, %v312
      %v314 = vcombine.high %v306, %v306
      %v315 = vcombine.high %v313, %v313
      %v316 = vcombine.high %v296, %v296
      %v318 = vunpack.c.l.s4 1983009808
      %v319 = vunpack.c.0.s8 %v318
      %v320 = vlaneseq
      %v321 = vshrl.u32 %v320, 7
      %v322 = vsub.s32 %v319, %v321
      %v323 = vrot.slane %v296, %v322
      %v325 = vunpack.c.l.s4 1983009808
      %v326 = vunpack.c.0.s8 %v325
      %v327 = vlaneseq
      %v328 = vshrl.u32 %v327, 7
      %v329 = vsub.s32 %v326, %v328
      %v330 = vrot.slane %v316, %v329
      %v331 = vcombine.high %v323, %v323
      %v332 = vcombine.high %v330, %v330
      %v341 = vsel %vm233, %v306, 0.0
      %v342 = vsel %vm234, %v314, 0.0
      %v343 = vsel %vm235, %v313, 0.0
      %v344 = vsel %vm236, %v315, 0.0
      %v345 = vsel %vm237, %v323, 0.0
      %v346 = vsel %vm238, %v331, 0.0
      %v347 = vsel %vm239, %v330, 0.0
      %v348 = vsel %vm240, %v332, 0.0
      %v349 = vmul.f32 %v287, %v341
      %v350 = vmul.f32 %v288, %v342
      %v351 = vmul.f32 %v289, %v343
      %v352 = vmul.f32 %v290, %v344
      %v353 = vmul.f32 %v291, %v345
      %v354 = vmul.f32 %v292, %v346
      %v355 = vmul.f32 %v293, %v347
      %v356 = vmul.f32 %v294, %v348
      %vm357 = vcmask 1041408
      %v358 = vsel %vm357, %v349, 0.0
      %v359 = vsel %vm357, %v350, 0.0
      %v360 = vadd.f32 %v358, %v359
      %v361 = vsel %vm357, %v351, 0.0
      %v362 = vadd.f32 %v360, %v361
      %v363 = vsel %vm357, %v352, 0.0
      %v364 = vadd.f32 %v362, %v363
      %v365 = vsel %vm357, %v353, 0.0
      %v366 = vadd.f32 %v364, %v365
      %v367 = vsel %vm357, %v354, 0.0
      %v368 = vadd.f32 %v366, %v367
      %v369 = vsel %vm357, %v355, 0.0
      %v370 = vadd.f32 %v368, %v369
      %v371 = vsel %vm357, %v356, 0.0
      %v372 = vadd.f32 %v370, %v371
      %373 = vadd.xlane.f32.xlu0 %v372
      %v374 = vpop.xlane.xlu0 %373
      %v375 = vadd.f32 %v287, %v341
      %v376 = vadd.f32 %v288, %v342
      %v377 = vadd.f32 %v289, %v343
      %v378 = vadd.f32 %v290, %v344
      %v379 = vadd.f32 %v291, %v345
      %v380 = vadd.f32 %v292, %v346
      %v381 = vadd.f32 %v293, %v347
      %v382 = vadd.f32 %v294, %v348
      %v383 = vsel %vm357, %v375, 0.0
      %v384 = vsel %vm357, %v376, 0.0
      %v385 = vadd.f32 %v383, %v384
      %v386 = vsel %vm357, %v377, 0.0
      %v387 = vadd.f32 %v385, %v386
      %v388 = vsel %vm357, %v378, 0.0
      %v389 = vadd.f32 %v387, %v388
      %v390 = vsel %vm357, %v379, 0.0
      %v391 = vadd.f32 %v389, %v390
      %v392 = vsel %vm357, %v380, 0.0
      %v393 = vadd.f32 %v391, %v392
      %v394 = vsel %vm357, %v381, 0.0
      %v395 = vadd.f32 %v393, %v394
      %v396 = vsel %vm357, %v382, 0.0
      %v397 = vadd.f32 %v395, %v396
      %398 = vadd.xlane.f32.xlu0 %v397
      %v399 = vpop.xlane.xlu0 %398
      %v400 = vld [vmem:[#allocation7] sm:$0x3]
      %v401 = vadd.f32 %v400, %v374
      %402 = vst [vmem:[#allocation7] sm:$0x3] %v401
      %v403 = vld [vmem:[#allocation8] sm:$0x3]
      %v404 = vadd.f32 %v403, %v399
      %405 = vst [vmem:[#allocation8] sm:$0x3] %v404
    $region29: #{tpu_custom_call.1} parent=1 // pred_fallthru
      _
    // Predicated region
    $region30: #{tpu_custom_call.1} parent=1 // pred_check
      _
    $region31: #{tpu_custom_call.1} parent=1 // pred_check_branch
      %407 = sbr.rel (0) target = $region33
    $region32: #{tpu_custom_call.1} parent=1 // pred_region
      %s409 = ssub.s32 32, 32
      %410 = vsyncadd [#allocation4], %s409
      %s412 = sshll.u32 [#allocation7], 4
      %s413 = int_to_ptr.vmem [resolvable:$true] %s412
      %415 = dma.vmem_to_hbm [thread:$0]  %s413, 32, %s2, [#allocation4]
    $region33: #{tpu_custom_call.1} parent=1 // pred_fallthru
      _
    // Predicated region
    $region34: #{tpu_custom_call.1} parent=1 // pred_check
      _
    $region35: #{tpu_custom_call.1} parent=1 // pred_check_branch
      %417 = sbr.rel (0) target = $region37
    $region36: #{tpu_custom_call.1} parent=1 // pred_region
      %s419 = ssub.s32 32, 32
      %420 = vsyncadd [#allocation9], %s419
      %s422 = sshll.u32 [#allocation8], 4
      %s423 = int_to_ptr.vmem [resolvable:$true] %s422
      %425 = dma.vmem_to_hbm [thread:$0]  %s423, 32, %s3, [#allocation9]
    $region37: #{tpu_custom_call.1} parent=1 // pred_fallthru
      _
    // Predicated region
    $region38: #{tpu_custom_call.1} parent=1 // pred_check
      _
    $region39: #{tpu_custom_call.1} parent=1 // pred_check_branch
      %427 = sbr.rel (0) target = $region41
    $region40: #{tpu_custom_call.1} parent=1 // pred_region
      %428 = dma.done [#allocation4], 32
    $region41: #{tpu_custom_call.1} parent=1 // pred_fallthru
      _
    // Predicated region
    $region42: #{tpu_custom_call.1} parent=1 // pred_check
      _
    $region43: #{tpu_custom_call.1} parent=1 // pred_check_branch
      %430 = sbr.rel (0) target = $region45
    $region44: #{tpu_custom_call.1} parent=1 // pred_region
      %431 = dma.done [#allocation9], 32
    $region45: #{tpu_custom_call.1} parent=1 // pred_fallthru
      _
    %432 = vsyncpa [#allocation3], 1
    %433 = vsyncpa [#allocation6], 1
    %434 = vsyncpa [#allocation4], 1
    %435 = vsyncpa [#allocation9], 1

</llo_original>
